<compile_context>
chip_gen: v7x
topology: tpu7x:2x2x1
jax: 0.10.0
libtpu: 0.0.40
codegen_flags: <defaults>
</compile_context>

<pallas_src>
import functools

import numpy as np
import jax
import jax.numpy as jnp
from jax.experimental import pallas as pl
from jax.experimental.pallas import tpu as pltpu


# ----------------------------- helpers ------------------------------------- #

def _cparams():
    return pltpu.CompilerParams(
        dimension_semantics=("parallel",),      # batch axis -> both TCs on v7x
        vmem_limit_bytes=32 * 1024 * 1024,      # explicit scoped-VMEM budget
    )


def _h_taps(dst, src):
    """Static (lo, hi, frac) taps for 1-D linear interp, align_corners=True."""
    taps = []
    for d in range(dst):
        c = 0.0 if dst == 1 else d * (src - 1) / (dst - 1)
        lo = min(max(int(np.floor(c)), 0), src - 1)
        hi = min(lo + 1, src - 1)
        taps.append((lo, hi, float(c - lo)))
    return tuple(taps)


def _lin_interp_matrix(dst, src):
    """1-D linear interpolation matrix, align_corners=True semantics."""
    A = np.zeros((dst, src), dtype=np.float32)
    for d, (lo, hi, frac) in enumerate(_h_taps(dst, src)):
        A[d, lo] += 1.0 - frac
        A[d, hi] += frac
    return A


def interp_matrix_w(dst, src, dtype=jnp.bfloat16):
    return jnp.asarray(_lin_interp_matrix(dst, src), dtype)


def _bilinear_up(f_hwc, aw, h_taps):
    """Separable bilinear upsample (align_corners=True) of f_hwc: (Hs, Ws, C).

    H direction: static 2-tap lerp (taps baked at trace time, VPU only).
    W direction: one small batched matmul with aw: (Wt, Ws).
    Returns (Ht, Wt, C) in float32.
    """
    Hs, Ws, C = f_hwc.shape
    Wt = aw.shape[0]
    Ht = len(h_taps)
    rows = []
    for (lo, hi, frac) in h_taps:
        r = f_hwc[lo].astype(jnp.float32)
        if hi != lo and frac > 0.0:
            r = r * (1.0 - frac) + f_hwc[hi].astype(jnp.float32) * frac
        rows.append(r)
    g = jnp.stack(rows, axis=0).astype(aw.dtype)             # (Ht, Ws, C)
    awb = jnp.broadcast_to(aw, (Ht, Wt, Ws))
    return jnp.einsum('hvw,hwc->hvc', awb, g,
                      preferred_element_type=jnp.float32)     # (Ht, Wt, C) f32


# ----------------------------- Pallas kernels ------------------------------ #

def _conv1x1_kernel(x_ref, w_ref, b_ref, o_ref, *, relu):
    """1x1 conv (+ folded BN) as flat matmul: y = act(x @ W + b).

    x_ref: (1, HW, Cin) bf16   w_ref: (Cin, Cout) bf16
    b_ref: (1, Cout) f32       o_ref: (1, HW, Cout)
    """
    y = jnp.dot(x_ref[0], w_ref[...], preferred_element_type=jnp.float32)
    y = y + b_ref[...]
    if relu:
        y = jnp.maximum(y, 0.0)
    o_ref[0] = y.astype(o_ref.dtype)


def _fpn_level_kernel(cx_ref, f_ref, w_ref, b_ref, aw_ref, o_ref, *, h_taps):
    """One FPN top-down level, fused: fpn_in 1x1+BN+ReLU, bilinear up, add.

    cx_ref: (1, Hh, Wh, Cin)  raw lateral feature
    f_ref : (1, Hs, Ws, D)    coarser running feature
    w_ref : (Cin, D)  b_ref: (1, D)  aw_ref: (Wh, Ws)
    o_ref : (1, Hh, Wh, D)    new running feature f
    """
    _, Hh, Wh, Cin = cx_ref.shape
    D = w_ref.shape[1]
    # lateral 1x1 conv + folded BN + ReLU (batched over H rows)
    wb = jnp.broadcast_to(w_ref[...], (Hh, Cin, D))
    cx = jnp.einsum('hwc,hcd->hwd', cx_ref[0], wb,
                    preferred_element_type=jnp.float32)
    cx = jnp.maximum(cx + b_ref[...], 0.0)
    # separable bilinear upsample of the coarser map, then residual add
    up = _bilinear_up(f_ref[0], aw_ref[...], h_taps)          # (Hh, Wh, D) f32
    o_ref[0] = (cx + up).astype(o_ref.dtype)


def _conv3x3_kernel(xp_ref, w_ref, b_ref, o_ref, *, relu):
    """3x3 conv (pad=1, folded BN) from a pre-padded input, 9 in-kernel taps.

    xp_ref: (1, H+2, W+2, Cin)  w_ref: (9, Cin, Cout)  b_ref: (1, Cout)
    o_ref : (1, H, W, Cout)
    """
    _, Hp, Wp, Cin = xp_ref.shape
    H, W = Hp - 2, Wp - 2
    Cout = w_ref.shape[2]
    x = xp_ref[0]
    acc = jnp.zeros((H, W, Cout), jnp.float32)
    for dy in range(3):
        for dx in range(3):
            tap = x[dy:dy + H, dx:dx + W, :]
            wb = jnp.broadcast_to(w_ref[dy * 3 + dx], (H, Cin, Cout))
            acc = acc + jnp.einsum('hwc,hcd->hwd', tap, wb,
                                   preferred_element_type=jnp.float32)
    acc = acc + b_ref[...]
    if relu:
        acc = jnp.maximum(acc, 0.0)
    o_ref[0] = acc.astype(o_ref.dtype)


def _fusion_kernel(x0_ref, x1_ref, aw1_ref, x2_ref, aw2_ref, x3_ref, aw3_ref,
                   o_ref, *, taps1, taps2, taps3):
    """fusion_out = x0 + up(x1) + up(x2) + up(x3), all ups separable bilinear."""
    acc = x0_ref[0].astype(jnp.float32)
    acc = acc + _bilinear_up(x1_ref[0], aw1_ref[...], taps1)
    acc = acc + _bilinear_up(x2_ref[0], aw2_ref[...], taps2)
    acc = acc + _bilinear_up(x3_ref[0], aw3_ref[...], taps3)
    o_ref[0] = acc.astype(o_ref.dtype)


def _last_kernel(xp_ref, w9_ref, b9_ref, wc_ref, bc_ref, o_ref):
    """conv_last fused: 3x3+BN+ReLU then 1x1 classifier (+bias), lane-padded out.

    xp_ref: (1, H+2, W+2, Cmid)  w9_ref: (9, Cmid, Cmid)  b9_ref: (1, Cmid)
    wc_ref: (Cmid, NCp)          bc_ref: (1, NCp)         o_ref: (1, H, W, NCp) f32
    """
    _, Hp, Wp, Cin = xp_ref.shape
    H, W = Hp - 2, Wp - 2
    Cmid = w9_ref.shape[2]
    NCp = wc_ref.shape[1]
    x = xp_ref[0]
    acc = jnp.zeros((H, W, Cmid), jnp.float32)
    for dy in range(3):
        for dx in range(3):
            tap = x[dy:dy + H, dx:dx + W, :]
            wb = jnp.broadcast_to(w9_ref[dy * 3 + dx], (H, Cin, Cmid))
            acc = acc + jnp.einsum('hwc,hcd->hwd', tap, wb,
                                   preferred_element_type=jnp.float32)
    y = jnp.maximum(acc + b9_ref[...], 0.0).astype(x.dtype)   # bf16 for the MXU
    wcb = jnp.broadcast_to(wc_ref[...], (H, Cmid, NCp))
    logits = jnp.einsum('hwc,hcd->hwd', y, wcb,
                        preferred_element_type=jnp.float32) + bc_ref[...]
    o_ref[0] = logits.astype(o_ref.dtype)


# ------------------------------- wrappers ----------------------------------- #

def conv1x1_p(x_flat, w, b, *, relu=True, out_dtype=jnp.bfloat16):
    N, HW, Cin = x_flat.shape
    Cout = w.shape[1]
    return pl.pallas_call(
        functools.partial(_conv1x1_kernel, relu=relu),
        out_shape=jax.ShapeDtypeStruct((N, HW, Cout), out_dtype),
        grid=(N,),
        in_specs=[pl.BlockSpec((1, HW, Cin), lambda n: (n, 0, 0)),
                  pl.BlockSpec((Cin, Cout), lambda n: (0, 0)),
                  pl.BlockSpec((1, Cout), lambda n: (0, 0))],
        out_specs=pl.BlockSpec((1, HW, Cout), lambda n: (n, 0, 0)),
        compiler_params=_cparams(),
    )(x_flat, w, b)


def fpn_level_p(cx, f, w, b):
    """Fused fpn_in 1x1 + bilinear upsample(f -> cx size) + add, per level."""
    N, Hh, Wh, Cin = cx.shape
    _, Hs, Ws, D = f.shape
    aw = interp_matrix_w(Wh, Ws)
    kern = functools.partial(_fpn_level_kernel, h_taps=_h_taps(Hh, Hs))
    return pl.pallas_call(
        kern,
        out_shape=jax.ShapeDtypeStruct((N, Hh, Wh, D), jnp.bfloat16),
        grid=(N,),
        in_specs=[pl.BlockSpec((1, Hh, Wh, Cin), lambda n: (n, 0, 0, 0)),
                  pl.BlockSpec((1, Hs, Ws, D), lambda n: (n, 0, 0, 0)),
                  pl.BlockSpec((Cin, D), lambda n: (0, 0)),
                  pl.BlockSpec((1, D), lambda n: (0, 0)),
                  pl.BlockSpec((Wh, Ws), lambda n: (0, 0))],
        out_specs=pl.BlockSpec((1, Hh, Wh, D), lambda n: (n, 0, 0, 0)),
        compiler_params=_cparams(),
    )(cx, f, w, b, aw)


def conv3x3_p(x, w9, b, *, relu=True, out_dtype=jnp.bfloat16):
    """3x3 conv, pad 1, stride 1 (+folded BN). Pads once in glue, taps in-kernel."""
    N, H, W, Cin = x.shape
    Cout = w9.shape[2]
    xp = jnp.pad(x, ((0, 0), (1, 1), (1, 1), (0, 0)))
    return pl.pallas_call(
        functools.partial(_conv3x3_kernel, relu=relu),
        out_shape=jax.ShapeDtypeStruct((N, H, W, Cout), out_dtype),
        grid=(N,),
        in_specs=[pl.BlockSpec((1, H + 2, W + 2, Cin), lambda n: (n, 0, 0, 0)),
                  pl.BlockSpec((9, Cin, Cout), lambda n: (0, 0, 0)),
                  pl.BlockSpec((1, Cout), lambda n: (0, 0))],
        out_specs=pl.BlockSpec((1, H, W, Cout), lambda n: (n, 0, 0, 0)),
        compiler_params=_cparams(),
    )(xp, w9, b)


def fusion_p(x0, x1, x2, x3):
    """out = x0 + up(x1) + up(x2) + up(x3), one fused kernel."""
    N, H0, W0, C = x0.shape

    def spec4(t):
        return pl.BlockSpec((1,) + tuple(t.shape[1:]), lambda n: (n, 0, 0, 0))

    aws, taps = [], []
    for t in (x1, x2, x3):
        aws.append(interp_matrix_w(W0, t.shape[2]))
        taps.append(_h_taps(H0, t.shape[1]))

    kern = functools.partial(_fusion_kernel,
                             taps1=taps[0], taps2=taps[1], taps3=taps[2])
    in_specs = [spec4(x0),
                spec4(x1), pl.BlockSpec(aws[0].shape, lambda n: (0, 0)),
                spec4(x2), pl.BlockSpec(aws[1].shape, lambda n: (0, 0)),
                spec4(x3), pl.BlockSpec(aws[2].shape, lambda n: (0, 0))]
    return pl.pallas_call(
        kern,
        out_shape=jax.ShapeDtypeStruct((N, H0, W0, C), jnp.bfloat16),
        grid=(N,),
        in_specs=in_specs,
        out_specs=pl.BlockSpec((1, H0, W0, C), lambda n: (n, 0, 0, 0)),
        compiler_params=_cparams(),
    )(x0, x1, aws[0], x2, aws[1], x3, aws[2])


def last_p(x, w9, b9, wc, bc):
    """conv_last fused: 3x3+BN+ReLU then 1x1 classifier. Output lane-padded."""
    N, H, W, Cmid = x.shape
    NCp = wc.shape[1]
    xp = jnp.pad(x, ((0, 0), (1, 1), (1, 1), (0, 0)))
    return pl.pallas_call(
        _last_kernel,
        out_shape=jax.ShapeDtypeStruct((N, H, W, NCp), jnp.float32),
        grid=(N,),
        in_specs=[pl.BlockSpec((1, H + 2, W + 2, Cmid), lambda n: (n, 0, 0, 0)),
                  pl.BlockSpec((9, Cmid, Cmid), lambda n: (0, 0, 0)),
                  pl.BlockSpec((1, Cmid), lambda n: (0, 0)),
                  pl.BlockSpec((Cmid, NCp), lambda n: (0, 0)),
                  pl.BlockSpec((1, NCp), lambda n: (0, 0))],
        out_specs=pl.BlockSpec((1, H, W, NCp), lambda n: (n, 0, 0, 0)),
        compiler_params=_cparams(),
    )(xp, w9, b9, wc, bc)


# ------------------------------ parameters ---------------------------------- #

def make_params(key, fpn_inplanes, fpn_dim, num_class):
    D, Dh = fpn_dim, fpn_dim // 2
    keys = iter(jax.random.split(key, 64))

    def conv1_w(cin, cout):
        return jax.random.normal(next(keys), (cin, cout), jnp.float32) / np.sqrt(cin)

    def conv3_w(cin, cout):
        return jax.random.normal(next(keys), (9, cin, cout), jnp.float32) / np.sqrt(9 * cin)

    def bn(c):
        gamma = 1.0 + 0.1 * jax.random.normal(next(keys), (c,), jnp.float32)
        beta = 0.1 * jax.random.normal(next(keys), (c,), jnp.float32)
        mean = 0.1 * jax.random.normal(next(keys), (c,), jnp.float32)
        var = 0.5 + jax.random.uniform(next(keys), (c,), jnp.float32)
        return gamma, beta, mean, var

    def fold(w, stats, eps=1e-5):
        gamma, beta, mean, var = stats
        scale = gamma / jnp.sqrt(var + eps)
        # fold BN in f32 first, then cast weights to bf16; bias stays f32
        return ((w * scale).astype(jnp.bfloat16),
                (beta - mean * scale).reshape(1, -1).astype(jnp.float32))

    params = {'fpn_dim': D}
    # ppm_replace: ConvBnAct(C_last -> fpn_dim, 1x1)  (orig hard-wires 256 -> 64)
    params['ppm'] = fold(conv1_w(fpn_inplanes[-1], D), bn(D))
    # fpn_in[i]: 1x1 conv + BN + ReLU
    params['fpn_in'] = [fold(conv1_w(fpn_inplanes[i], D), bn(D)) for i in range(3)]
    # fpn_out[i]: conv3x3_bn_relu(fpn_dim -> fpn_dim//2)
    params['fpn_out'] = [fold(conv3_w(D, Dh), bn(Dh)) for _ in range(3)]
    # ppm_2: ConvBnAct(fpn_dim -> fpn_dim//2, 3x3, pad 1)
    params['ppm_2'] = fold(conv3_w(D, Dh), bn(Dh))
    # conv_last: conv3x3_bn_relu(fpn_dim//2 -> fpn_dim//2) then 1x1 classifier
    params['last3x3'] = fold(conv3_w(Dh, Dh), bn(Dh))
    ncp = int(np.ceil(num_class / 128.0)) * 128          # lane-pad classifier
    wc = jnp.zeros((Dh, ncp), jnp.float32)
    wc = wc.at[:, :num_class].set(conv1_w(Dh, num_class))
    bc = jnp.zeros((1, ncp), jnp.float32)
    bc = bc.at[:, :num_class].set(
        0.1 * jax.random.normal(next(keys), (1, num_class), jnp.float32))
    params['cls'] = (wc.astype(jnp.bfloat16), bc)
    return params


# ------------------------------- forward ------------------------------------ #

def upernet_align_head5_forward(feats_nhwc, params, num_class):
    """feats_nhwc: dict '4','8','16','32' in NHWC (bf16). Returns NHWC logits."""
    x4, x8, x16, x32 = (feats_nhwc['4'], feats_nhwc['8'],
                        feats_nhwc['16'], feats_nhwc['32'])
    N, H32, W32, C32 = x32.shape
    D = params['fpn_dim']

    # ppm_replace on the deepest level (1x1 conv + BN + ReLU)
    wp, bp = params['ppm']
    psp = conv1x1_p(x32.reshape(N, H32 * W32, C32), wp, bp, relu=True)
    psp = psp.reshape(N, H32, W32, D)

    # top-down path: per level, one fused kernel (fpn_in + upsample + add),
    # then the fpn_out 3x3 for the fusion source.
    f = psp
    laterals = [x4, x8, x16]
    fpn_outs = {}
    for i in (2, 1, 0):
        w1, b1 = params['fpn_in'][i]
        f = fpn_level_p(laterals[i], f, w1, b1)                 # (N, Hi, Wi, D)
        w3, b3 = params['fpn_out'][i]
        fpn_outs[i] = conv3x3_p(f, w3, b3, relu=True)           # (N, Hi, Wi, D//2)

    # fusion: finest fpn_out + upsampled coarser fpn_outs + upsampled ppm_2(psp)
    x3 = conv3x3_p(psp, *params['ppm_2'], relu=True)            # (N, H32, W32, D//2)
    fusion = fusion_p(fpn_outs[0], fpn_outs[1], fpn_outs[2], x3)

    # conv_last: 3x3+BN+ReLU then 1x1 classifier with bias (fused kernel)
    w9, b9 = params['last3x3']
    wc, bc = params['cls']
    logits = last_p(fusion, w9, b9, wc, bc)
    return logits[..., :num_class]


# --------------------------------- main -------------------------------------- #

if __name__ == "__main__":
    key = jax.random.PRNGKey(0)
    N = 2
    # scaled-down synthetic config (orig: fpn_inplanes=[256,512,1024,2048],
    # ppm_replace hard-wires 256->64 so fpn_dim is effectively 64)
    fpn_inplanes = [32, 48, 64, 128]
    fpn_dim = 64
    num_class = 5

    k4, k8, k16, k32, kp = jax.random.split(key, 5)
    # inputs in PyTorch NCHW convention
    feats_nchw = {
        '4':  jax.random.normal(k4,  (N, fpn_inplanes[0], 16, 16), jnp.float32),
        '8':  jax.random.normal(k8,  (N, fpn_inplanes[1], 8, 8), jnp.float32),
        '16': jax.random.normal(k16, (N, fpn_inplanes[2], 4, 4), jnp.float32),
        '32': jax.random.normal(k32, (N, fpn_inplanes[3], 2, 2), jnp.float32),
    }
    params = make_params(kp, fpn_inplanes, fpn_dim, num_class)

    # layout: NCHW -> NHWC, bf16 activations (f32 accumulation inside kernels)
    feats_nhwc = {k: jnp.transpose(v, (0, 2, 3, 1)).astype(jnp.bfloat16)
                  for k, v in feats_nchw.items()}

    out_nhwc = upernet_align_head5_forward(feats_nhwc, params, num_class)
    out_nchw = jnp.transpose(out_nhwc, (0, 3, 1, 2))  # back to PyTorch NCHW
    jax.block_until_ready(out_nchw)

    assert out_nchw.shape == (N, num_class, 16, 16), out_nchw.shape
    assert bool(jnp.all(jnp.isfinite(out_nchw)))
    print("KERNEL_OK")
</pallas_src>

<mosaic_0001>
module attributes {stable_mosaic.version = 11 : i64} {
  func.func @_conv1x1_kernel(%arg0: i32, %arg1: memref<1x4x128xbf16, #tpu.memory_space<vmem>>, %arg2: memref<128x64xbf16, #tpu.memory_space<vmem>>, %arg3: memref<1x64xf32, #tpu.memory_space<vmem>>, %arg4: memref<1x4x64xbf16, #tpu.memory_space<vmem>>) attributes {dimension_semantics = [#tpu.dimension_semantics<parallel>], iteration_bounds = array<i64: 2>, scalar_prefetch = 0 : i64, scratch_operands = 0 : i64, tpu.core_type = #tpu.core_type<tc>, window_params = [{transform_indices = @transform_0, window_bounds = array<i64: 1, 4, 128>}, {pipeline_mode = #tpu.pipeline_mode<synchronous>, transform_indices = @transform_1, window_bounds = array<i64: 128, 64>}, {pipeline_mode = #tpu.pipeline_mode<synchronous>, transform_indices = @transform_2, window_bounds = array<i64: 1, 64>}, {transform_indices = @transform_3, window_bounds = array<i64: 1, 4, 64>}]} {
    %c0 = arith.constant 0 : index
    %c0_0 = arith.constant 0 : index
    %c0_1 = arith.constant 0 : index
    %0 = vector.load %arg1[%c0, %c0_0, %c0_1] : memref<1x4x128xbf16, #tpu.memory_space<vmem>>, vector<1x4x128xbf16>
    %1 = vector.shape_cast %0 : vector<1x4x128xbf16> to vector<4x128xbf16>
    %c0_2 = arith.constant 0 : index
    %c0_3 = arith.constant 0 : index
    %2 = vector.load %arg2[%c0_2, %c0_3] : memref<128x64xbf16, #tpu.memory_space<vmem>>, vector<128x64xbf16>
    %cst = arith.constant dense<0.000000e+00> : vector<4x64xf32>
    %3 = tpu.matmul %1, %2, %cst {dimension_numbers = #tpu.dot_dimension_numbers<[1], [0], [0], [1], [0, 0, 1, 1], [], []>} : vector<4x128xbf16>, vector<128x64xbf16>, vector<4x64xf32> -> vector<4x64xf32>
    %c0_4 = arith.constant 0 : index
    %c0_5 = arith.constant 0 : index
    %4 = vector.load %arg3[%c0_4, %c0_5] : memref<1x64xf32, #tpu.memory_space<vmem>>, vector<1x64xf32>
    %5 = vector.broadcast %4 : vector<1x64xf32> to vector<4x64xf32>
    %6 = arith.addf %3, %5 : vector<4x64xf32>
    %cst_6 = arith.constant 0.000000e+00 : f32
    %7 = vector.broadcast %cst_6 : f32 to vector<4x64xf32>
    %8 = arith.maximumf %6, %7 : vector<4x64xf32>
    %9 = arith.truncf %8 : vector<4x64xf32> to vector<4x64xbf16>
    %c0_7 = arith.constant 0 : index
    %c0_8 = arith.constant 0 : index
    %c0_9 = arith.constant 0 : index
    %10 = vector.load %arg4[%c0_7, %c0_8, %c0_9] : memref<1x4x64xbf16, #tpu.memory_space<vmem>>, vector<1x4x64xbf16>
    %11 = vector.shape_cast %10 : vector<1x4x64xbf16> to vector<4x64xbf16>
    %12 = vector.shape_cast %9 : vector<4x64xbf16> to vector<1x4x64xbf16>
    tpu.vector_store %arg4[%c0_7, %c0_8, %c0_9], %12 {strides = array<i32>} : memref<1x4x64xbf16, #tpu.memory_space<vmem>>, vector<1x4x64xbf16>,
    return
  }
  func.func @transform_0(%arg0: i32) -> (i32, i32, i32) {
    %c0_i32 = arith.constant 0 : i32
    %c0_i32_0 = arith.constant 0 : i32
    %c0_i32_1 = arith.constant 0 : i32
    return %arg0, %c0_i32, %c0_i32_0 : i32, i32, i32
  }
  func.func @transform_1(%arg0: i32) -> (i32, i32) {
    %c0_i32 = arith.constant 0 : i32
    %c0_i32_0 = arith.constant 0 : i32
    %c0_i32_1 = arith.constant 0 : i32
    return %c0_i32, %c0_i32_0 : i32, i32
  }
  func.func @transform_2(%arg0: i32) -> (i32, i32) {
    %c0_i32 = arith.constant 0 : i32
    %c0_i32_0 = arith.constant 0 : i32
    %c0_i32_1 = arith.constant 0 : i32
    return %c0_i32, %c0_i32_0 : i32, i32
  }
  func.func @transform_3(%arg0: i32) -> (i32, i32, i32) {
    %c0_i32 = arith.constant 0 : i32
    %c0_i32_0 = arith.constant 0 : i32
    %c0_i32_1 = arith.constant 0 : i32
    return %arg0, %c0_i32, %c0_i32_0 : i32, i32, i32
  }
}

</mosaic_0001>

<llo_original>
// kernel: tpu_custom_call.1
$region0: #{tpu_custom_call.1}
  #allocation0 [shape = 'u32[]', space=smem, size = 0x4, offset = 0x4, fixed_abs, tag = 'smem constant byte address 0x4 - core index']
  #allocation1 [shape = 'u32[144,128]{1,0:T(1,128)}', space=vmem, size = 0x12000, scoped, tag = 'internal scratch']
  %s0 = inlined_call_operand.vmem [shape: bf16[2,4,128], index: 0, kind: input, shape index: {}]
  %s1 = inlined_call_operand.vmem [shape: bf16[128,64], index: 1, kind: input, shape index: {}]
  %s2 = inlined_call_operand.vmem [shape: f32[1,64], index: 2, kind: input, shape index: {}]
  %s3 = inlined_call_operand.hbm [shape: bf16[2,4,64], index: 3, kind: output, shape index: {}]
  %s4 = sld [smem:[#allocation0]]
  $region45: #{tpu_custom_call.1} parent=0
    _
  %s6 = ssub.s32 1, %s4
  %s7 = scalar_select 0, %s6, %s4
  $region1: #{tpu_custom_call.1} parent=0
    #allocation2 [shape = 'u8[2048]{0}', space=vmem, size = 0x800, scoped, tag = 'output window, operand 0']
    #allocation3 [shape = 's32[2]{0}', space=sflag, size = 0x8, scoped, tag = 'scoped memory for tpu_custom_call.1']
    %8 = vsyncpa [#allocation3], 0
    %s9 = scalar_lea.sflag [#allocation3], 1
    %10 = vsyncpa %s9, 0
    loop: start=0, step=1, limit=4
    $region2: #{tpu_custom_call.1} parent=1 // loop_pre_header
      _
    $region3: #{tpu_custom_call.1} parent=1 // loop_header
      %s12 = sphi 0, %s16
      %p13 = scmp.ge.s32.totalorder %s12, 4
      %s22 = sphi 0, %s24
      %s25 = sphi 0, %s22
      %s26 = sphi 0, %s25
      %s42 = sphi 0, %s26
      %s46 = sphi 0, %s46
      %s48 = sphi 0, %s46
      %s49 = sphi 0, %s48
      %s63 = sphi 0, %s49
      %s67 = sphi 0, %s67
      %s69 = sphi 0, %s67
      %s70 = sphi 0, %s69
      %s84 = sphi 0, %s70
      %s90 = sphi 0, %s92
      %s93 = sphi 0, %s90
      %s94 = sphi 0, %s93
      %s110 = sphi 0, %s94
    $region4: #{tpu_custom_call.1} parent=1 // loop_header_branch
      %15 = sbr.rel (%p13) target = $region8
    $region5: #{tpu_custom_call.1} parent=1 // loop_body
      %s17 = ssub.s32 %s12, 1
      %s18 = ssub.s32 %s12, 2
      %s19 = sadd.s32 %s12, 1
      %s20 = ssub.s32 %s12, %s19
      %p21 = scmp.eq.s32.totalorder %s20, 0
      %s23 = sadd.s32 %s22, 1
      %s24 = scalar_select %p21, %s22, %s23
      %p27 = pneg %p21
      %p28 = scmp.eq.s32.totalorder %s12, 1
      %p29 = por %p27, %p28
      %p30 = scmp.ne.s32.totalorder %s22, %s25
      %p31 = scmp.eq.s32.totalorder %s12, 0
      %p32 = por %p30, %p31
      %p33 = scmp.ne.s32.totalorder %s22, %s25
      %p34 = scmp.eq.s32.totalorder %s17, 1
      %p35 = por %p33, %p34
      %p36 = scmp.ne.s32.totalorder %s25, %s26
      %p37 = scmp.eq.s32.totalorder %s17, 0
      %p38 = por %p36, %p37
      %p39 = scmp.ne.s32.totalorder %s25, %s26
      %p40 = scmp.eq.s32.totalorder %s18, 1
      %p41 = por %p39, %p40
      %p43 = scmp.ne.s32.totalorder %s26, %s42
      %p44 = scmp.eq.s32.totalorder %s18, 0
      %p45 = por %p43, %p44
      %s47 = sadd.s32 %s46, 1
      %p50 = scmp.eq.s32.totalorder %s12, 1
      %p51 = scmp.ne.s32.totalorder %s46, %s48
      %p52 = scmp.eq.s32.totalorder %s12, 0
      %p53 = por %p51, %p52
      %p54 = scmp.ne.s32.totalorder %s46, %s48
      %p55 = scmp.eq.s32.totalorder %s17, 1
      %p56 = por %p54, %p55
      %p57 = scmp.ne.s32.totalorder %s48, %s49
      %p58 = scmp.eq.s32.totalorder %s17, 0
      %p59 = por %p57, %p58
      %p60 = scmp.ne.s32.totalorder %s48, %s49
      %p61 = scmp.eq.s32.totalorder %s18, 1
      %p62 = por %p60, %p61
      %p64 = scmp.ne.s32.totalorder %s49, %s63
      %p65 = scmp.eq.s32.totalorder %s18, 0
      %p66 = por %p64, %p65
      %s68 = sadd.s32 %s67, 1
      %p71 = scmp.eq.s32.totalorder %s12, 1
      %p72 = scmp.ne.s32.totalorder %s67, %s69
      %p73 = scmp.eq.s32.totalorder %s12, 0
      %p74 = por %p72, %p73
      %p75 = scmp.ne.s32.totalorder %s67, %s69
      %p76 = scmp.eq.s32.totalorder %s17, 1
      %p77 = por %p75, %p76
      %p78 = scmp.ne.s32.totalorder %s69, %s70
      %p79 = scmp.eq.s32.totalorder %s17, 0
      %p80 = por %p78, %p79
      %p81 = scmp.ne.s32.totalorder %s69, %s70
      %p82 = scmp.eq.s32.totalorder %s18, 1
      %p83 = por %p81, %p82
      %p85 = scmp.ne.s32.totalorder %s70, %s84
      %p86 = scmp.eq.s32.totalorder %s18, 0
      %p87 = por %p85, %p86
      %s88 = ssub.s32 %s12, %s19
      %p89 = scmp.eq.s32.totalorder %s88, 0
      %s91 = sadd.s32 %s90, 1
      %s92 = scalar_select %p89, %s90, %s91
      %p95 = pneg %p89
      %p96 = scmp.eq.s32.totalorder %s12, 1
      %p97 = por %p95, %p96
      %p98 = scmp.ne.s32.totalorder %s90, %s93
      %p99 = scmp.eq.s32.totalorder %s12, 0
      %p100 = por %p98, %p99
      %p101 = scmp.ne.s32.totalorder %s90, %s93
      %p102 = scmp.eq.s32.totalorder %s17, 1
      %p103 = por %p101, %p102
      %p104 = scmp.ne.s32.totalorder %s93, %s94
      %p105 = scmp.eq.s32.totalorder %s17, 0
      %p106 = por %p104, %p105
      %p107 = scmp.ne.s32.totalorder %s93, %s94
      %p108 = scmp.eq.s32.totalorder %s18, 1
      %p109 = por %p107, %p108
      %p111 = scmp.ne.s32.totalorder %s94, %s110
      %p112 = scmp.eq.s32.totalorder %s18, 0
      %p113 = por %p111, %p112
      %p114 = scmp.le.s32.totalorder 1, %s12
      %p115 = scmp.lt.s32.totalorder %s12, 3
      %p116 = pnand %p114, %p115
      %p117 = pneg %p116
      // Predicated region
      $region9: #{tpu_custom_call.1} parent=5 // pred_check
        _
      $region10: #{tpu_custom_call.1} parent=5 // pred_check_branch
        %119 = sbr.rel (%p116) target = $region12
      $region11: #{tpu_custom_call.1} parent=5 // pred_region
        %s120 = ssub.s32 %s12, 1
        // Predicated region
        $region13: #{tpu_custom_call.1} parent=11 // pred_check
          %p121 = pneg %p59
        $region14: #{tpu_custom_call.1} parent=11 // pred_check_branch
          %123 = sbr.rel (%p121) target = $region16
        $region15: #{tpu_custom_call.1} parent=11 // pred_region
          _
        $region16: #{tpu_custom_call.1} parent=11 // pred_fallthru
          _
        // Predicated region
        $region17: #{tpu_custom_call.1} parent=11 // pred_check
          %p124 = pneg %p80
        $region18: #{tpu_custom_call.1} parent=11 // pred_check_branch
          %126 = sbr.rel (%p124) target = $region20
        $region19: #{tpu_custom_call.1} parent=11 // pred_region
          _
        $region20: #{tpu_custom_call.1} parent=11 // pred_fallthru
          _
      $region12: #{tpu_custom_call.1} parent=5 // pred_fallthru
        _
      %p127 = scmp.lt.s32.totalorder %s12, 2
      // Predicated region
      $region21: #{tpu_custom_call.1} parent=5 // pred_check
        %p128 = pneg %p127
      $region22: #{tpu_custom_call.1} parent=5 // pred_check_branch
        %130 = sbr.rel (%p128) target = $region24
      $region23: #{tpu_custom_call.1} parent=5 // pred_region
        // Predicated region
        $region25: #{tpu_custom_call.1} parent=23 // pred_check
          %p131 = pneg %p32
        $region26: #{tpu_custom_call.1} parent=23 // pred_check_branch
          %133 = sbr.rel (%p131) target = $region28
        $region27: #{tpu_custom_call.1} parent=23 // pred_region
          %p134 = scmp.lt.s32.totalorder %s12, 1
          %s135 = scalar_select %p134, %s12, 1
          %s136 = smul.addr %s135, 2
          %s137 = scalar_lea.vmem %s0, %s136
        $region28: #{tpu_custom_call.1} parent=23 // pred_fallthru
          _
      $region24: #{tpu_custom_call.1} parent=5 // pred_fallthru
        _
      %p138 = scmp.le.s32.totalorder 1, %s12
      %p139 = scmp.lt.s32.totalorder %s12, 3
      %p140 = pnand %p138, %p139
      %p141 = pneg %p140
      // Predicated region
      $region29: #{tpu_custom_call.1} parent=5 // pred_check
        _
      $region30: #{tpu_custom_call.1} parent=5 // pred_check_branch
        %143 = sbr.rel (%p140) target = $region32
      $region31: #{tpu_custom_call.1} parent=5 // pred_region
        %s144 = ssub.s32 %s12, 1
        %p145 = scmp.lt.s32.totalorder %s17, 1
        %s146 = scalar_select %p145, %s17, 1
        %s147 = smul.addr %s146, 2
        %s148 = scalar_lea.vmem %s0, %s147
        %p149 = pneg %p38
        %p150 = pneg %p35
        %p151 = pneg %p59
        %p152 = pneg %p56
        %p153 = pneg %p80
        %p154 = pneg %p77
        %p155 = pneg %p106
        %p156 = pneg %p103
        %s157 = sand.u32 %s93, 1
        %s158 = scalar_lea.sflag [#allocation3], %s157
        %s159 = sand.u32 %s93, 1
        %s160 = smul.addr %s159, 2
        %s161 = scalar_lea.vmem [#allocation2], %s160
        %p162 = scmp.lt.s32.totalorder %s17, 1
        %s163 = scalar_select %p162, %s17, 1
        %s164 = smul.addr %s163, 2
        %s165 = scalar_lea.vmem %s0, %s164
        %v167 = vld [vmem:[%s165] sm:$0x3]
        %v168 = vld [vmem:[%s1] sm:$0xf]
        %v169 = vld [vmem:[%s1 + $0x4] sm:$0xf]
        %v170 = vld [vmem:[%s1 + $0x8] sm:$0xf]
        %v171 = vld [vmem:[%s1 + $0xc] sm:$0xf]
        %v172 = vld [vmem:[%s1 + $0x10] sm:$0xf]
        %v173 = vld [vmem:[%s1 + $0x14] sm:$0xf]
        %v174 = vld [vmem:[%s1 + $0x18] sm:$0xf]
        %v175 = vld [vmem:[%s1 + $0x1c] sm:$0xf]
        %v176 = vld [vmem:[%s1 + $0x20] sm:$0xf]
        %v177 = vld [vmem:[%s1 + $0x24] sm:$0xf]
        %v178 = vld [vmem:[%s1 + $0x28] sm:$0xf]
        %v179 = vld [vmem:[%s1 + $0x2c] sm:$0xf]
        %v180 = vld [vmem:[%s1 + $0x30] sm:$0xf]
        %v181 = vld [vmem:[%s1 + $0x34] sm:$0xf]
        %v182 = vld [vmem:[%s1 + $0x38] sm:$0xf]
        %v183 = vld [vmem:[%s1 + $0x3c] sm:$0xf]
        %v184 = vld [vmem:[%s2] sm:$0x1]
        %v186 = vlaneseq
        %v187 = vshrl.u32 %v186, 7
        %v188 = vsub.s32 0, %v187
        %v189 = vrot.slane %v184, %v188
        %v207 = vunpack.c.l.b16 %v168
        %v208 = vunpack.c.l.b16 %v169
        %v209 = vunpack.c.l.b16 %v170
        %v210 = vunpack.c.l.b16 %v171
        %v211 = vunpack.c.l.b16 %v172
        %v212 = vunpack.c.l.b16 %v173
        %v213 = vunpack.c.l.b16 %v174
        %v214 = vunpack.c.l.b16 %v175
        %v215 = vunpack.c.l.b16 %v176
        %v216 = vunpack.c.l.b16 %v177
        %v217 = vunpack.c.l.b16 %v178
        %v218 = vunpack.c.l.b16 %v179
        %v219 = vunpack.c.l.b16 %v180
        %v220 = vunpack.c.l.b16 %v181
        %v221 = vunpack.c.l.b16 %v182
        %v222 = vunpack.c.l.b16 %v183
        %v223 = vpack.c.b16 %v208, %v207
        %v224 = vpack.c.b16 %v210, %v209
        %v225 = vpack.c.b16 %v212, %v211
        %v226 = vpack.c.b16 %v214, %v213
        %v227 = vpack.c.b16 %v216, %v215
        %v228 = vpack.c.b16 %v218, %v217
        %v229 = vpack.c.b16 %v220, %v219
        %v230 = vpack.c.b16 %v222, %v221
        %239 = vmatprep.subr.bf16.mxu0 0
        %240 = vmatpush1.bf16.msra.mxu0 %v223
        %241 = vmatprep.subr.bf16.mxu0 0
        %242 = vmatpush1.bf16.msra.mxu0 %v224
        %243 = vmatprep.subr.bf16.mxu0 0
        %244 = vmatpush1.bf16.msra.mxu0 %v225
        %245 = vmatprep.subr.bf16.mxu0 0
        %246 = vmatpush1.bf16.msra.mxu0 %v226
        %247 = vmatprep.subr.bf16.mxu0 0
        %248 = vmatpush1.bf16.msra.mxu0 %v227
        %249 = vmatprep.subr.bf16.mxu0 0
        %250 = vmatpush1.bf16.msra.mxu0 %v228
        %251 = vmatprep.subr.bf16.mxu0 0
        %252 = vmatpush1.bf16.msra.mxu0 %v229
        %253 = vmatprep.subr.bf16.mxu0 0
        %254 = vmatpush1.bf16.msra.mxu0 %v230
        %255 = vmatprep.subr.bf16.mxu0 0
        %256 = vmatpush1.bf16.msra.mxu0 0
        %257 = vmatprep.subr.bf16.mxu0 0
        %258 = vmatpush1.bf16.msra.mxu0 0
        %259 = vmatprep.subr.bf16.mxu0 0
        %260 = vmatpush1.bf16.msra.mxu0 0
        %261 = vmatprep.subr.bf16.mxu0 0
        %262 = vmatpush1.bf16.msra.mxu0 0
        %263 = vmatprep.subr.bf16.mxu0 0
        %264 = vmatpush1.bf16.msra.mxu0 0
        %265 = vmatprep.subr.bf16.mxu0 0
        %266 = vmatpush1.bf16.msra.mxu0 0
        %267 = vmatprep.subr.bf16.mxu0 0
        %268 = vmatpush1.bf16.msra.mxu0 0
        %269 = vmatprep.subr.bf16.mxu0 0
        %270 = vmatpush1.bf16.msra.mxu0 0
        %271 = vmatprep.mubr.bf16.mxu0 0
        %272 = vmatmul.mubr.bf16.gmra.mrb[0].mxu0 %v167
        %v273 = vpop.f32.mrb[0].mxu0
        %v274 = vadd.f32 %v189, %v273
        %v275 = vpop.f32.mrb[0].mxu0
        %v276 = vpop.f32.mrb[0].mxu0
        %v277 = vpop.f32.mrb[0].mxu0
        %278 = vdwg.mxu0
        %v279 = vmax.f32 %v274, 0.0
        %v280 = vpack.c.bf16 %v279, %v279
        %vm281 = vcmask 517120
        %282 = vst.msk [vmem:[%s161] sm:$0x3] %vm281, %v280
        %s283 = sand.u32 %s93, 1
        %s284 = scalar_lea.sflag [#allocation3], %s283
        %s285 = sand.u32 %s93, 1
        %s286 = smul.addr %s285, 2
        %s287 = scalar_lea.vmem [#allocation2], %s286
        // Predicated region
        $region33: #{tpu_custom_call.1} parent=31 // pred_check
          %p288 = pneg %p103
        $region34: #{tpu_custom_call.1} parent=31 // pred_check_branch
          %290 = sbr.rel (%p288) target = $region36
        $region35: #{tpu_custom_call.1} parent=31 // pred_region
          %s292 = ssub.s32 32, 32
          %293 = vsyncadd %s284, %s292
          %s294 = smul.addr %s17, 32
          %s295 = scalar_lea.hbm %s3, %s294
          %s297 = sshll.u32 %s287, 4
          %s298 = int_to_ptr.vmem [resolvable:$true] %s297
          %300 = dma.vmem_to_hbm [thread:$0]  %s298, 32, %s295, %s284
        $region36: #{tpu_custom_call.1} parent=31 // pred_fallthru
          _
      $region32: #{tpu_custom_call.1} parent=5 // pred_fallthru
        _
      %p301 = scmp.le.s32.totalorder 2, %s12
      // Predicated region
      $region37: #{tpu_custom_call.1} parent=5 // pred_check
        %p302 = pneg %p301
      $region38: #{tpu_custom_call.1} parent=5 // pred_check_branch
        %304 = sbr.rel (%p302) target = $region40
      $region39: #{tpu_custom_call.1} parent=5 // pred_region
        %s305 = ssub.s32 %s12, 2
        // Predicated region
        $region41: #{tpu_custom_call.1} parent=39 // pred_check
          %p306 = pneg %p109
        $region42: #{tpu_custom_call.1} parent=39 // pred_check_branch
          %308 = sbr.rel (%p306) target = $region44
        $region43: #{tpu_custom_call.1} parent=39 // pred_region
          %s309 = sand.u32 %s94, 1
          %s310 = scalar_lea.sflag [#allocation3], %s309
          %s311 = sand.u32 %s94, 1
          %s312 = smul.addr %s311, 2
          %s313 = scalar_lea.vmem [#allocation2], %s312
          %314 = dma.done %s310, 32
        $region44: #{tpu_custom_call.1} parent=39 // pred_fallthru
          _
      $region40: #{tpu_custom_call.1} parent=5 // pred_fallthru
        _
    $region6: #{tpu_custom_call.1} parent=1 // loop_footer
      %s16 = sadd.s32 1, %s12
    $region7: #{tpu_custom_call.1} parent=1 // loop_footer_branch
      %11 = sbr.rel target = $region3
    $region8: #{tpu_custom_call.1} parent=1 // loop_exit
      _
    %315 = vsyncpa [#allocation3], 1
    %s316 = scalar_lea.sflag [#allocation3], 1
    %317 = vsyncpa %s316, 1

</llo_original>
